<compile_context>
chip_gen: v7x
topology: tpu7x:2x2x1
jax: 0.10.0
libtpu: 0.0.40
codegen_flags: <defaults>
</compile_context>

<pallas_src>
import functools

import jax
import jax.numpy as jnp
from jax.experimental import pallas as pl
from jax.experimental.pallas import tpu as pltpu


def _decomp_kernel(x_ref, res_ref, mean_ref, *, kernel_size, pad, seq_len):
    # x_ref / res_ref / mean_ref: (L, lane_tile); time on sublanes, C on lanes.
    xf = x_ref[...].astype(jnp.float32)
    lanes = xf.shape[-1]
    x_first = xf[0:1, :]                      # (1, lanes)
    x_last = xf[seq_len - 1:seq_len, :]       # (1, lanes)

    # window_sum[t] = sum_{d=-pad}^{pad} x[clip(t + d, 0, L-1)]
    use_scan = kernel_size > 13

    if not use_scan:
        # Small K: unrolled shifted taps with edge replication fused into the
        # (tiny) concatenated edge blocks; independent partials, tree-reduced.
        def fwd(d):   # y[t] = x[min(t + d, L - 1)]
            if d >= seq_len:
                return jnp.broadcast_to(x_last, (seq_len, lanes))
            return jnp.concatenate(
                [xf[d:, :], jnp.broadcast_to(x_last, (d, lanes))], axis=0)

        def bwd(d):   # y[t] = x[max(t - d, 0)]
            if d >= seq_len:
                return jnp.broadcast_to(x_first, (seq_len, lanes))
            return jnp.concatenate(
                [jnp.broadcast_to(x_first, (d, lanes)), xf[:seq_len - d, :]],
                axis=0)

        parts = [xf]
        for d in range(1, pad + 1):
            parts.append(fwd(d))
            parts.append(bwd(d))
        while len(parts) > 1:   # tree reduction -> VALU co-issue
            nxt = [parts[i] + parts[i + 1] for i in range(0, len(parts) - 1, 2)]
            if len(parts) % 2:
                nxt.append(parts[-1])
            parts = nxt
        window_sum = parts[0]
    else:
        # Large K (e.g. 25): O(log L) prefix sum + shifted difference, so the
        # per-element work is independent of kernel_size.
        cs = xf
        s = 1
        while s < seq_len:   # Hillis-Steele inclusive prefix sum along time
            cs = cs + jnp.concatenate(
                [jnp.zeros((s, lanes), jnp.float32), cs[:seq_len - s, :]],
                axis=0)
            s *= 2
        total = cs[seq_len - 1:seq_len, :]
        # hi[t] = cs[min(t + pad, L-1)]
        if pad >= seq_len:
            hi = jnp.broadcast_to(total, (seq_len, lanes))
        else:
            hi = jnp.concatenate(
                [cs[pad:, :], jnp.broadcast_to(total, (pad, lanes))], axis=0)
        # lo[t] = cs[t - pad - 1] if t - pad - 1 >= 0 else 0
        if pad + 1 >= seq_len:
            lo = jnp.zeros((seq_len, lanes), jnp.float32)
        else:
            lo = jnp.concatenate(
                [jnp.zeros((pad + 1, lanes), jnp.float32),
                 cs[:seq_len - pad - 1, :]], axis=0)
        # Edge-replication correction: rows near the edges re-count x[0]/x[L-1].
        row = jax.lax.broadcasted_iota(
            jnp.int32, (seq_len, 1), 0).astype(jnp.float32)
        n_below = jnp.maximum(jnp.float32(pad) - row, 0.0)
        n_above = jnp.maximum(row - jnp.float32(seq_len - 1 - pad), 0.0)
        window_sum = hi - lo + n_below * x_first + n_above * x_last

    mean = window_sum * jnp.float32(1.0 / kernel_size)
    mean_ref[...] = mean.astype(mean_ref.dtype)
    res_ref[...] = (xf - mean).astype(res_ref.dtype)


def series_decomp(x, kernel_size):
    """x: (B, L, C). Returns (res, moving_mean), both (B, L, C) in x.dtype."""
    assert kernel_size % 2 == 1, "series_decomp requires odd kernel_size"
    B, L, C = x.shape
    pad = (kernel_size - 1) // 2

    LANE = 128
    c_pad = LANE * pl.cdiv(C, LANE)

    # VMEM-aware lane-tile selection (v5e/v6e: 128 MiB, v7x: 64 MiB).
    try:
        vmem_bytes = int(pltpu.get_tpu_info().vmem_capacity_bytes)
    except Exception:
        vmem_bytes = 64 * 1024 * 1024
    # Per 128-lane chunk: ~6 pipelined f32 buffers (1 in + 2 out, double
    # buffered) plus ~4 full-tile f32 value intermediates in the body.
    chunk_bytes = 10 * L * LANE * 4
    budget = max(vmem_bytes // 4, chunk_bytes)
    max_chunks = max(1, budget // chunk_bytes)
    lane_tile = LANE
    for t in (512, 384, 256, 128):
        if t <= LANE * max_chunks and c_pad % t == 0:
            lane_tile = t
            break
    n_lane = c_pad // lane_tile

    # Pad channels to a multiple of 128 so every store is a full, unmasked vst.
    xp = x if c_pad == C else jnp.pad(x, ((0, 0), (0, 0), (0, c_pad - C)))

    kernel = functools.partial(
        _decomp_kernel, kernel_size=kernel_size, pad=pad, seq_len=L)

    block = (None, L, lane_tile)        # leading batch dim squeezed in-kernel
    idx = lambda b, j: (b, 0, j)

    block_bytes = chunk_bytes * (lane_tile // LANE)
    vmem_limit = int(min(max(2 * block_bytes, 32 * 1024 * 1024),
                         max(vmem_bytes * 3 // 4, 32 * 1024 * 1024)))

    res_p, mean_p = pl.pallas_call(
        kernel,
        out_shape=(
            jax.ShapeDtypeStruct((B, L, c_pad), x.dtype),
            jax.ShapeDtypeStruct((B, L, c_pad), x.dtype),
        ),
        grid=(B, n_lane),
        in_specs=[pl.BlockSpec(block, idx)],
        out_specs=(pl.BlockSpec(block, idx), pl.BlockSpec(block, idx)),
        compiler_params=pltpu.CompilerParams(
            dimension_semantics=("parallel", "parallel"),
            vmem_limit_bytes=vmem_limit,
        ),
    )(xp)

    if c_pad != C:
        res_p = res_p[:, :, :C]
        mean_p = mean_p[:, :, :C]
    return res_p, mean_p


def _reference(x, kernel_size):
    pad = (kernel_size - 1) // 2
    front = jnp.repeat(x[:, 0:1, :], pad, axis=1)
    end = jnp.repeat(x[:, -1:, :], pad, axis=1)
    xpad = jnp.concatenate([front, x, end], axis=1)
    L = x.shape[1]
    windows = jnp.stack(
        [xpad[:, j:j + L, :] for j in range(kernel_size)], axis=0)
    mean = jnp.mean(windows, axis=0)
    return x - mean, mean


if __name__ == "__main__":
    key = jax.random.PRNGKey(0)
    k1, k2 = jax.random.split(key)

    # Case 1: small kernel_size=5 (unrolled-taps path).
    B, L, C = 2, 16, 8
    x = jax.random.normal(k1, (B, L, C), dtype=jnp.float32)
    res, mean = series_decomp(x, 5)
    res, mean = jax.block_until_ready((res, mean))
    res_r, mean_r = _reference(x, 5)
    assert res.shape == (B, L, C) and mean.shape == (B, L, C)
    assert jnp.allclose(mean, mean_r, atol=1e-5), "moving mean mismatch (K=5)"
    assert jnp.allclose(res, res_r, atol=1e-5), "residual mismatch (K=5)"

    # Case 2: realistic kernel_size=25 (prefix-sum path).
    B2, L2, C2 = 2, 32, 8
    x2 = jax.random.normal(k2, (B2, L2, C2), dtype=jnp.float32)
    res2, mean2 = series_decomp(x2, 25)
    res2, mean2 = jax.block_until_ready((res2, mean2))
    res2_r, mean2_r = _reference(x2, 25)
    assert jnp.allclose(mean2, mean2_r, atol=1e-5), "moving mean mismatch (K=25)"
    assert jnp.allclose(res2, res2_r, atol=1e-5), "residual mismatch (K=25)"

    print("KERNEL_OK")
</pallas_src>

<mosaic_0001>
module attributes {stable_mosaic.version = 11 : i64} {
  func.func @_decomp_kernel(%arg0: i32, %arg1: i32, %arg2: memref<1x16x128xf32, #tpu.memory_space<vmem>>, %arg3: memref<1x16x128xf32, #tpu.memory_space<vmem>>, %arg4: memref<1x16x128xf32, #tpu.memory_space<vmem>>) attributes {dimension_semantics = [#tpu.dimension_semantics<parallel>, #tpu.dimension_semantics<parallel>], iteration_bounds = array<i64: 2, 1>, scalar_prefetch = 0 : i64, scratch_operands = 0 : i64, tpu.core_type = #tpu.core_type<tc>, window_params = [{transform_indices = @transform_0, window_bounds = array<i64: 1, 16, 128>}, {transform_indices = @transform_1, window_bounds = array<i64: 1, 16, 128>}, {transform_indices = @transform_2, window_bounds = array<i64: 1, 16, 128>}]} {
    %c0 = arith.constant 0 : index
    %c0_0 = arith.constant 0 : index
    %c0_1 = arith.constant 0 : index
    %0 = vector.load %arg2[%c0, %c0_0, %c0_1] : memref<1x16x128xf32, #tpu.memory_space<vmem>>, vector<1x16x128xf32>
    %1 = vector.shape_cast %0 : vector<1x16x128xf32> to vector<16x128xf32>
    %2 = vector.extract_strided_slice %1 {offsets = [0, 0], sizes = [1, 128], strides = [1, 1]} : vector<16x128xf32> to vector<1x128xf32>
    %3 = vector.extract_strided_slice %1 {offsets = [15, 0], sizes = [1, 128], strides = [1, 1]} : vector<16x128xf32> to vector<1x128xf32>
    %4 = vector.extract_strided_slice %1 {offsets = [1, 0], sizes = [15, 128], strides = [1, 1]} : vector<16x128xf32> to vector<15x128xf32>
    %5 = tpu.concatenate %4, %3 in 0 : vector<15x128xf32>, vector<1x128xf32> -> vector<16x128xf32>
    %6 = vector.extract_strided_slice %1 {offsets = [0, 0], sizes = [15, 128], strides = [1, 1]} : vector<16x128xf32> to vector<15x128xf32>
    %7 = tpu.concatenate %2, %6 in 0 : vector<1x128xf32>, vector<15x128xf32> -> vector<16x128xf32>
    %8 = vector.extract_strided_slice %1 {offsets = [2, 0], sizes = [14, 128], strides = [1, 1]} : vector<16x128xf32> to vector<14x128xf32>
    %9 = vector.shape_cast %3 : vector<1x128xf32> to vector<1x128xf32>
    %10 = vector.broadcast %9 : vector<1x128xf32> to vector<2x128xf32>
    %11 = tpu.concatenate %8, %10 in 0 : vector<14x128xf32>, vector<2x128xf32> -> vector<16x128xf32>
    %12 = vector.shape_cast %2 : vector<1x128xf32> to vector<1x128xf32>
    %13 = vector.broadcast %12 : vector<1x128xf32> to vector<2x128xf32>
    %14 = vector.extract_strided_slice %1 {offsets = [0, 0], sizes = [14, 128], strides = [1, 1]} : vector<16x128xf32> to vector<14x128xf32>
    %15 = tpu.concatenate %13, %14 in 0 : vector<2x128xf32>, vector<14x128xf32> -> vector<16x128xf32>
    %16 = arith.addf %1, %5 : vector<16x128xf32>
    %17 = arith.addf %7, %11 : vector<16x128xf32>
    %18 = arith.addf %16, %17 : vector<16x128xf32>
    %19 = arith.addf %18, %15 : vector<16x128xf32>
    %cst = arith.constant 2.000000e-01 : f32
    %20 = vector.broadcast %cst : f32 to vector<16x128xf32>
    %21 = arith.mulf %19, %20 : vector<16x128xf32>
    %c0_2 = arith.constant 0 : index
    %c0_3 = arith.constant 0 : index
    %c0_4 = arith.constant 0 : index
    %22 = vector.load %arg4[%c0_2, %c0_3, %c0_4] : memref<1x16x128xf32, #tpu.memory_space<vmem>>, vector<1x16x128xf32>
    %23 = vector.shape_cast %22 : vector<1x16x128xf32> to vector<16x128xf32>
    %24 = vector.shape_cast %21 : vector<16x128xf32> to vector<1x16x128xf32>
    tpu.vector_store %arg4[%c0_2, %c0_3, %c0_4], %24 {strides = array<i32>} : memref<1x16x128xf32, #tpu.memory_space<vmem>>, vector<1x16x128xf32>,
    %25 = arith.subf %1, %21 : vector<16x128xf32>
    %c0_5 = arith.constant 0 : index
    %c0_6 = arith.constant 0 : index
    %c0_7 = arith.constant 0 : index
    %26 = vector.load %arg3[%c0_5, %c0_6, %c0_7] : memref<1x16x128xf32, #tpu.memory_space<vmem>>, vector<1x16x128xf32>
    %27 = vector.shape_cast %26 : vector<1x16x128xf32> to vector<16x128xf32>
    %28 = vector.shape_cast %25 : vector<16x128xf32> to vector<1x16x128xf32>
    tpu.vector_store %arg3[%c0_5, %c0_6, %c0_7], %28 {strides = array<i32>} : memref<1x16x128xf32, #tpu.memory_space<vmem>>, vector<1x16x128xf32>,
    return
  }
  func.func @transform_0(%arg0: i32, %arg1: i32) -> (i32, i32, i32) {
    %c0_i32 = arith.constant 0 : i32
    %c0_i32_0 = arith.constant 0 : i32
    return %arg0, %c0_i32, %arg1 : i32, i32, i32
  }
  func.func @transform_1(%arg0: i32, %arg1: i32) -> (i32, i32, i32) {
    %c0_i32 = arith.constant 0 : i32
    %c0_i32_0 = arith.constant 0 : i32
    return %arg0, %c0_i32, %arg1 : i32, i32, i32
  }
  func.func @transform_2(%arg0: i32, %arg1: i32) -> (i32, i32, i32) {
    %c0_i32 = arith.constant 0 : i32
    %c0_i32_0 = arith.constant 0 : i32
    return %arg0, %c0_i32, %arg1 : i32, i32, i32
  }
}

</mosaic_0001>

<llo_original>
// kernel: tpu_custom_call.1
$region0: #{tpu_custom_call.1}
  #allocation0 [shape = 'u32[]', space=smem, size = 0x4, offset = 0x4, fixed_abs, tag = 'smem constant byte address 0x4 - core index']
  #allocation1 [shape = 'u32[144,128]{1,0:T(1,128)}', space=vmem, size = 0x12000, scoped, tag = 'internal scratch']
  %s0 = inlined_call_operand.hbm [shape: f32[2,16,128], index: 0, kind: input, shape index: {}]
  %s1 = inlined_call_operand.hbm [shape: f32[2,16,128], index: 1, kind: output, shape index: {0}]
  %s2 = inlined_call_operand.hbm [shape: f32[2,16,128], index: 2, kind: output, shape index: {1}]
  %3 = xla_tuple %s1, %s2
  %s4 = sld [smem:[#allocation0]]
  $region49: #{tpu_custom_call.1} parent=0
    _
  %s6 = ssub.s32 1, %s4
  %s7 = scalar_select 0, %s6, %s4
  $region1: #{tpu_custom_call.1} parent=0
    #allocation2 [shape = 'u8[16384]{0}', space=vmem, size = 0x4000, scoped, tag = 'input window, operand 0']
    #allocation3 [shape = 's32[2]{0}', space=sflag, size = 0x8, scoped, tag = 'scoped memory for tpu_custom_call.1']
    #allocation4 [shape = 's32[2]{0}', space=sflag, size = 0x8, scoped, tag = 'scoped memory for tpu_custom_call.1']
    #allocation5 [shape = 'u8[16384]{0}', space=vmem, size = 0x4000, scoped, tag = 'output window, operand 0']
    #allocation6 [shape = 'u8[16384]{0}', space=vmem, size = 0x4000, scoped, tag = 'output window, operand 1']
    #allocation7 [shape = 's32[2]{0}', space=sflag, size = 0x8, scoped, tag = 'scoped memory for tpu_custom_call.1']
    %8 = vsyncpa [#allocation3], 0
    %s9 = scalar_lea.sflag [#allocation3], 1
    %10 = vsyncpa %s9, 0
    %11 = vsyncpa [#allocation4], 0
    %s12 = scalar_lea.sflag [#allocation4], 1
    %13 = vsyncpa %s12, 0
    %14 = vsyncpa [#allocation7], 0
    %s15 = scalar_lea.sflag [#allocation7], 1
    %16 = vsyncpa %s15, 0
    loop: start=0, step=1, limit=4
    $region2: #{tpu_custom_call.1} parent=1 // loop_pre_header
      _
    $region3: #{tpu_custom_call.1} parent=1 // loop_header
      %s18 = sphi 0, %s22
      %p19 = scmp.ge.s32.totalorder %s18, 4
      %s25 = sphi 0, %s37
      %s26 = sphi 0, %s33
      %s27 = sphi 0, %s25
      %s28 = sphi 0, %s26
      %s29 = sphi 0, %s27
      %s30 = sphi 0, %s28
      %s42 = sphi 0, %s44
      %s45 = sphi 0, %s42
      %s46 = sphi 0, %s45
      %s62 = sphi 0, %s46
      %s70 = sphi 0, %s72
      %s73 = sphi 0, %s70
      %s74 = sphi 0, %s73
      %s90 = sphi 0, %s74
      %s98 = sphi 0, %s100
      %s101 = sphi 0, %s98
      %s102 = sphi 0, %s101
      %s118 = sphi 0, %s102
    $region4: #{tpu_custom_call.1} parent=1 // loop_header_branch
      %21 = sbr.rel (%p19) target = $region8
    $region5: #{tpu_custom_call.1} parent=1 // loop_body
      %s23 = ssub.s32 %s18, 1
      %s24 = ssub.s32 %s18, 2
      %s31 = sadd.s32 1, %s26
      %p32 = scmp.ge.s32.totalorder %s31, 1
      %s33 = scalar_select %p32, 0, %s31
      %s34 = sadd.s32 1, %s25
      %s35 = scalar_select %p32, %s34, %s25
      %p36 = scmp.ge.s32.totalorder %s35, 2
      %s37 = scalar_select %p36, 0, %s35
      %s38 = ssub.s32 %s25, %s37
      %s39 = ssub.s32 %s26, %s33
      %s40 = sor.u32 %s38, %s39
      %p41 = scmp.eq.s32.totalorder %s40, 0
      %s43 = sadd.s32 %s42, 1
      %s44 = scalar_select %p41, %s42, %s43
      %p47 = pneg %p41
      %p48 = scmp.eq.s32.totalorder %s18, 1
      %p49 = por %p47, %p48
      %p50 = scmp.ne.s32.totalorder %s42, %s45
      %p51 = scmp.eq.s32.totalorder %s18, 0
      %p52 = por %p50, %p51
      %p53 = scmp.ne.s32.totalorder %s42, %s45
      %p54 = scmp.eq.s32.totalorder %s23, 1
      %p55 = por %p53, %p54
      %p56 = scmp.ne.s32.totalorder %s45, %s46
      %p57 = scmp.eq.s32.totalorder %s23, 0
      %p58 = por %p56, %p57
      %p59 = scmp.ne.s32.totalorder %s45, %s46
      %p60 = scmp.eq.s32.totalorder %s24, 1
      %p61 = por %p59, %p60
      %p63 = scmp.ne.s32.totalorder %s46, %s62
      %p64 = scmp.eq.s32.totalorder %s24, 0
      %p65 = por %p63, %p64
      %s66 = ssub.s32 %s25, %s37
      %s67 = ssub.s32 %s26, %s33
      %s68 = sor.u32 %s66, %s67
      %p69 = scmp.eq.s32.totalorder %s68, 0
      %s71 = sadd.s32 %s70, 1
      %s72 = scalar_select %p69, %s70, %s71
      %p75 = pneg %p69
      %p76 = scmp.eq.s32.totalorder %s18, 1
      %p77 = por %p75, %p76
      %p78 = scmp.ne.s32.totalorder %s70, %s73
      %p79 = scmp.eq.s32.totalorder %s18, 0
      %p80 = por %p78, %p79
      %p81 = scmp.ne.s32.totalorder %s70, %s73
      %p82 = scmp.eq.s32.totalorder %s23, 1
      %p83 = por %p81, %p82
      %p84 = scmp.ne.s32.totalorder %s73, %s74
      %p85 = scmp.eq.s32.totalorder %s23, 0
      %p86 = por %p84, %p85
      %p87 = scmp.ne.s32.totalorder %s73, %s74
      %p88 = scmp.eq.s32.totalorder %s24, 1
      %p89 = por %p87, %p88
      %p91 = scmp.ne.s32.totalorder %s74, %s90
      %p92 = scmp.eq.s32.totalorder %s24, 0
      %p93 = por %p91, %p92
      %s94 = ssub.s32 %s25, %s37
      %s95 = ssub.s32 %s26, %s33
      %s96 = sor.u32 %s94, %s95
      %p97 = scmp.eq.s32.totalorder %s96, 0
      %s99 = sadd.s32 %s98, 1
      %s100 = scalar_select %p97, %s98, %s99
      %p103 = pneg %p97
      %p104 = scmp.eq.s32.totalorder %s18, 1
      %p105 = por %p103, %p104
      %p106 = scmp.ne.s32.totalorder %s98, %s101
      %p107 = scmp.eq.s32.totalorder %s18, 0
      %p108 = por %p106, %p107
      %p109 = scmp.ne.s32.totalorder %s98, %s101
      %p110 = scmp.eq.s32.totalorder %s23, 1
      %p111 = por %p109, %p110
      %p112 = scmp.ne.s32.totalorder %s101, %s102
      %p113 = scmp.eq.s32.totalorder %s23, 0
      %p114 = por %p112, %p113
      %p115 = scmp.ne.s32.totalorder %s101, %s102
      %p116 = scmp.eq.s32.totalorder %s24, 1
      %p117 = por %p115, %p116
      %p119 = scmp.ne.s32.totalorder %s102, %s118
      %p120 = scmp.eq.s32.totalorder %s24, 0
      %p121 = por %p119, %p120
      %p122 = scmp.le.s32.totalorder 1, %s18
      %p123 = scmp.lt.s32.totalorder %s18, 3
      %p124 = pnand %p122, %p123
      %p125 = pneg %p124
      // Predicated region
      $region9: #{tpu_custom_call.1} parent=5 // pred_check
        _
      $region10: #{tpu_custom_call.1} parent=5 // pred_check_branch
        %127 = sbr.rel (%p124) target = $region12
      $region11: #{tpu_custom_call.1} parent=5 // pred_region
        %s128 = ssub.s32 %s18, 1
      $region12: #{tpu_custom_call.1} parent=5 // pred_fallthru
        _
      %p129 = scmp.lt.s32.totalorder %s18, 2
      // Predicated region
      $region13: #{tpu_custom_call.1} parent=5 // pred_check
        %p130 = pneg %p129
      $region14: #{tpu_custom_call.1} parent=5 // pred_check_branch
        %132 = sbr.rel (%p130) target = $region16
      $region15: #{tpu_custom_call.1} parent=5 // pred_region
        // Predicated region
        $region17: #{tpu_custom_call.1} parent=15 // pred_check
          %p133 = pneg %p52
        $region18: #{tpu_custom_call.1} parent=15 // pred_check_branch
          %135 = sbr.rel (%p133) target = $region20
        $region19: #{tpu_custom_call.1} parent=15 // pred_region
          %s136 = sand.u32 %s42, 1
          %s137 = scalar_lea.sflag [#allocation3], %s136
          %s138 = sand.u32 %s42, 1
          %s139 = smul.addr %s138, 16
          %s140 = scalar_lea.vmem [#allocation2], %s139
          %s142 = ssub.s32 256, 256
          %143 = vsyncadd %s137, %s142
          %s144 = smul.addr %s25, 2
          %s145 = sadd.s32 %s26, %s144
          %s146 = smul.addr %s145, 128
          %s147 = scalar_lea.hbm %s0, %s146
          %s148 = sshll.u32 %s140, 4
          %s149 = int_to_ptr.vmem [resolvable:$true] %s148
          %154 = dma.hbm_to_vmem [thread:$0]  %s147, 256, %s149, %s137, 128, 128, 8
        $region20: #{tpu_custom_call.1} parent=15 // pred_fallthru
          _
      $region16: #{tpu_custom_call.1} parent=5 // pred_fallthru
        _
      %p155 = scmp.le.s32.totalorder 1, %s18
      %p156 = scmp.lt.s32.totalorder %s18, 3
      %p157 = pnand %p155, %p156
      %p158 = pneg %p157
      // Predicated region
      $region21: #{tpu_custom_call.1} parent=5 // pred_check
        _
      $region22: #{tpu_custom_call.1} parent=5 // pred_check_branch
        %160 = sbr.rel (%p157) target = $region24
      $region23: #{tpu_custom_call.1} parent=5 // pred_region
        %s161 = ssub.s32 %s18, 1
        %s162 = sand.u32 %s45, 1
        %s163 = scalar_lea.sflag [#allocation3], %s162
        %s164 = sand.u32 %s45, 1
        %s165 = smul.addr %s164, 16
        %s166 = scalar_lea.vmem [#allocation2], %s165
        // Predicated region
        $region25: #{tpu_custom_call.1} parent=23 // pred_check
          %p167 = pneg %p58
        $region26: #{tpu_custom_call.1} parent=23 // pred_check_branch
          %169 = sbr.rel (%p167) target = $region28
        $region27: #{tpu_custom_call.1} parent=23 // pred_region
          %170 = dma.done %s163, 256
        $region28: #{tpu_custom_call.1} parent=23 // pred_fallthru
          _
        %s171 = sand.u32 %s45, 1
        %s172 = scalar_lea.sflag [#allocation3], %s171
        %s173 = sand.u32 %s45, 1
        %s174 = smul.addr %s173, 16
        %s175 = scalar_lea.vmem [#allocation2], %s174
        %p176 = pneg %p58
        %p177 = pneg %p55
        %p178 = pneg %p86
        %p179 = pneg %p83
        %s180 = sand.u32 %s73, 1
        %s181 = scalar_lea.sflag [#allocation4], %s180
        %s182 = sand.u32 %s73, 1
        %s183 = smul.addr %s182, 16
        %s184 = scalar_lea.vmem [#allocation5], %s183
        %p185 = pneg %p114
        %p186 = pneg %p111
        %s187 = sand.u32 %s101, 1
        %s188 = scalar_lea.sflag [#allocation7], %s187
        %s189 = sand.u32 %s101, 1
        %s190 = smul.addr %s189, 16
        %s191 = scalar_lea.vmem [#allocation6], %s190
        %v192 = vld [vmem:[%s166] sm:$0xff]
        %v193 = vld [vmem:[%s166 + $0x8] sm:$0xff]
        %vm196 = vcmask 1046528
        %v197 = vrot.slane %v192, 1
        %v198 = vrot.slane %v193, 1
        %v199 = vsel %vm196, %v197, %v198
        %v202 = vsel %vm196, %v198, %v193
        %vm203 = vcmask 1040384
        %v204 = vrot.slane %v192, 7
        %v205 = vrot.slane %v193, 7
        %v206 = vsel %vm203, %v204, %v205
        %v209 = vsel %vm203, %v192, %v204
        %v210 = vlaneseq
        %v211 = vshrl.u32 %v210, 7
        %v212 = vsub.s32 7, %v211
        %v213 = vrot.slane %v193, %v212
        %vm214 = vcmask 1045504
        %v215 = vrot.slane %v192, 2
        %v216 = vrot.slane %v193, 2
        %v217 = vsel %vm214, %v215, %v216
        %v220 = vsel %vm214, %v216, %v213
        %v221 = vlaneseq
        %v222 = vshrl.u32 %v221, 7
        %v223 = vsub.s32 0, %v222
        %v224 = vrot.slane %v192, %v223
        %vm225 = vcmask 1041408
        %v226 = vrot.slane %v192, 6
        %v227 = vrot.slane %v193, 6
        %v228 = vsel %vm225, %v226, %v227
        %v231 = vsel %vm225, %v224, %v226
        %v232 = vadd.f32 %v192, %v199
        %v233 = vadd.f32 %v193, %v202
        %v234 = vadd.f32 %v209, %v217
        %v235 = vadd.f32 %v206, %v220
        %v236 = vadd.f32 %v232, %v234
        %v237 = vadd.f32 %v233, %v235
        %v238 = vadd.f32 %v236, %v231
        %v239 = vadd.f32 %v237, %v228
        %v240 = vmul.f32 %v238, 0.2
        %v241 = vmul.f32 %v239, 0.2
        %242 = vst [vmem:[%s191] sm:$0xff] %v240
        %243 = vst [vmem:[%s191 + $0x8] sm:$0xff] %v241
        %v244 = vsub.f32 %v192, %v240
        %v245 = vsub.f32 %v193, %v241
        %246 = vst [vmem:[%s184] sm:$0xff] %v244
        %247 = vst [vmem:[%s184 + $0x8] sm:$0xff] %v245
        %s248 = sand.u32 %s73, 1
        %s249 = scalar_lea.sflag [#allocation4], %s248
        %s250 = sand.u32 %s73, 1
        %s251 = smul.addr %s250, 16
        %s252 = scalar_lea.vmem [#allocation5], %s251
        %s253 = sand.u32 %s101, 1
        %s254 = scalar_lea.sflag [#allocation7], %s253
        %s255 = sand.u32 %s101, 1
        %s256 = smul.addr %s255, 16
        %s257 = scalar_lea.vmem [#allocation6], %s256
        // Predicated region
        $region29: #{tpu_custom_call.1} parent=23 // pred_check
          %p258 = pneg %p83
        $region30: #{tpu_custom_call.1} parent=23 // pred_check_branch
          %260 = sbr.rel (%p258) target = $region32
        $region31: #{tpu_custom_call.1} parent=23 // pred_region
          %s262 = ssub.s32 256, 256
          %263 = vsyncadd %s249, %s262
          %s264 = smul.addr %s27, 2
          %s265 = sadd.s32 %s28, %s264
          %s266 = smul.addr %s265, 128
          %s267 = scalar_lea.hbm %s1, %s266
          %s268 = sshll.u32 %s252, 4
          %s269 = int_to_ptr.vmem [resolvable:$true] %s268
          %274 = dma.vmem_to_hbm [thread:$0]  %s269, 256, %s267, %s249, 128, 128, 8
        $region32: #{tpu_custom_call.1} parent=23 // pred_fallthru
          _
        // Predicated region
        $region33: #{tpu_custom_call.1} parent=23 // pred_check
          %p275 = pneg %p111
        $region34: #{tpu_custom_call.1} parent=23 // pred_check_branch
          %277 = sbr.rel (%p275) target = $region36
        $region35: #{tpu_custom_call.1} parent=23 // pred_region
          %s279 = ssub.s32 256, 256
          %280 = vsyncadd %s254, %s279
          %s281 = smul.addr %s27, 2
          %s282 = sadd.s32 %s28, %s281
          %s283 = smul.addr %s282, 128
          %s284 = scalar_lea.hbm %s2, %s283
          %s285 = sshll.u32 %s257, 4
          %s286 = int_to_ptr.vmem [resolvable:$true] %s285
          %291 = dma.vmem_to_hbm [thread:$0]  %s286, 256, %s284, %s254, 128, 128, 8
        $region36: #{tpu_custom_call.1} parent=23 // pred_fallthru
          _
      $region24: #{tpu_custom_call.1} parent=5 // pred_fallthru
        _
      %p292 = scmp.le.s32.totalorder 2, %s18
      // Predicated region
      $region37: #{tpu_custom_call.1} parent=5 // pred_check
        %p293 = pneg %p292
      $region38: #{tpu_custom_call.1} parent=5 // pred_check_branch
        %295 = sbr.rel (%p293) target = $region40
      $region39: #{tpu_custom_call.1} parent=5 // pred_region
        %s296 = ssub.s32 %s18, 2
        // Predicated region
        $region41: #{tpu_custom_call.1} parent=39 // pred_check
          %p297 = pneg %p89
        $region42: #{tpu_custom_call.1} parent=39 // pred_check_branch
          %299 = sbr.rel (%p297) target = $region44
        $region43: #{tpu_custom_call.1} parent=39 // pred_region
          %s300 = sand.u32 %s74, 1
          %s301 = scalar_lea.sflag [#allocation4], %s300
          %s302 = sand.u32 %s74, 1
          %s303 = smul.addr %s302, 16
          %s304 = scalar_lea.vmem [#allocation5], %s303
          %305 = dma.done %s301, 256
        $region44: #{tpu_custom_call.1} parent=39 // pred_fallthru
          _
        // Predicated region
        $region45: #{tpu_custom_call.1} parent=39 // pred_check
          %p306 = pneg %p117
        $region46: #{tpu_custom_call.1} parent=39 // pred_check_branch
          %308 = sbr.rel (%p306) target = $region48
        $region47: #{tpu_custom_call.1} parent=39 // pred_region
          %s309 = sand.u32 %s102, 1
          %s310 = scalar_lea.sflag [#allocation7], %s309
          %s311 = sand.u32 %s102, 1
          %s312 = smul.addr %s311, 16
          %s313 = scalar_lea.vmem [#allocation6], %s312
          %314 = dma.done %s310, 256
        $region48: #{tpu_custom_call.1} parent=39 // pred_fallthru
          _
      $region40: #{tpu_custom_call.1} parent=5 // pred_fallthru
        _
    $region6: #{tpu_custom_call.1} parent=1 // loop_footer
      %s22 = sadd.s32 1, %s18
    $region7: #{tpu_custom_call.1} parent=1 // loop_footer_branch
      %17 = sbr.rel target = $region3
    $region8: #{tpu_custom_call.1} parent=1 // loop_exit
      _
    %315 = vsyncpa [#allocation3], 1
    %s316 = scalar_lea.sflag [#allocation3], 1
    %317 = vsyncpa %s316, 1
    %318 = vsyncpa [#allocation4], 1
    %s319 = scalar_lea.sflag [#allocation4], 1
    %320 = vsyncpa %s319, 1
    %321 = vsyncpa [#allocation7], 1
    %s322 = scalar_lea.sflag [#allocation7], 1
    %323 = vsyncpa %s322, 1

</llo_original>
